<compile_context>
chip_gen: v7x
topology: tpu7x:2x2x1
jax: 0.10.0
libtpu: 0.0.40
codegen_flags: <defaults>
</compile_context>

<pallas_src>
import jax
import jax.numpy as jnp
from jax.experimental import pallas as pl
from jax.experimental.pallas import tpu as pltpu


def _round_up(x, m):
    return (x + m - 1) // m * m


def fused_conv_kernel(x_ref, lens_ref, w_ref, b_ref, o_ref, slab_ref):
    """One grid step = TILE_B full sequences, all layers fused.

    x_ref    : VMEM (TILE_B, S, C_pad)            bf16  channel-padded input
    lens_ref : VMEM (TILE_B, 1, 1)                int32 sequence lengths
    w_ref    : VMEM (L, conv_size*C_pad, C_pad)   bf16  stacked im2col weights
    b_ref    : VMEM (L, 1, C_pad)                 f32   stacked biases
    o_ref    : VMEM (TILE_B, S, C_pad)            f32   channel-padded output
    slab_ref : VMEM (TILE_B, S + 2*pad, C_pad)    bf16  zero-haloed activations
    """
    tile_b, S, c_pad = x_ref.shape
    n_layers, k_dim, c_out_pad = w_ref.shape
    conv_size = k_dim // c_pad
    pad = (conv_size - 1) // 2

    # Length mask: rows at positions >= batch_lens[b] are zeroed (this is the
    # in-place fill_(0) on the input and on the final output in PyTorch).
    t_idx = jax.lax.broadcasted_iota(jnp.int32, (tile_b, S, 1), 1)
    valid = t_idx < lens_ref[...]                       # (TILE_B, S, 1) bool

    # Zero the whole slab once; only [pad : pad+S) is ever rewritten, so the
    # halo rows stay zero for every layer (this IS the Conv1d 'same' padding).
    slab_ref[...] = jnp.zeros_like(slab_ref)
    slab_ref[:, pl.ds(pad, S), :] = jnp.where(
        valid, x_ref[...], 0).astype(slab_ref.dtype)

    # Static unroll over layers -- activations never leave VMEM.
    for l in range(n_layers):
        slab = slab_ref[...]                            # (TILE_B, S+2p, C_pad)

        # im2col: taps concatenated on the lane axis -> one big MXU matmul
        # with M = TILE_B*S rows and K = conv_size*C_pad.
        cols = jnp.concatenate(
            [slab[:, k:k + S, :] for k in range(conv_size)], axis=-1
        ).reshape(tile_b * S, conv_size * c_pad)

        acc = jnp.dot(cols, w_ref[l], preferred_element_type=jnp.float32)
        acc = jnp.maximum(acc + b_ref[l], 0.0)          # bias + ReLU (f32)
        acc = acc.reshape(tile_b, S, c_out_pad)

        if l + 1 < n_layers:
            # No masking between layers (matches PyTorch, which only masks
            # the input and the final output).
            slab_ref[:, pl.ds(pad, S), :] = acc.astype(slab_ref.dtype)
        else:
            o_ref[...] = jnp.where(valid, acc, 0.0).astype(o_ref.dtype)


def _pick_tile_b(B, S, c_pad, conv_size, n_layers,
                 budget_bytes=24 * 1024 * 1024):
    """Largest divisor of B whose per-step VMEM footprint fits the budget
    (sized against v7x's 64 MiB physical / 32 MiB scoped VMEM)."""
    pad = (conv_size - 1) // 2

    def footprint(tb):
        x_b = tb * S * c_pad * 2 * 2                       # bf16 in, dbl-buf
        o_b = tb * S * c_pad * 4 * 2                       # f32 out, dbl-buf
        slab = tb * (S + 2 * pad) * c_pad * 2              # bf16 scratch slab
        cols = tb * S * conv_size * c_pad * 2              # im2col temporary
        acc = tb * S * c_pad * 4                           # f32 matmul result
        w_b = n_layers * conv_size * c_pad * c_pad * 2 * 2 # bf16 weights
        return x_b + o_b + slab + cols + acc + w_b

    tb = B
    while tb > 1 and footprint(tb) > budget_bytes:
        tb -= 1
        while tb > 1 and B % tb:
            tb -= 1
    return tb


def conv_layer_forward(embed, batch_lens, weights, biases, conv_size):
    """ConvLayer.forward: (batch, step, emb) -> (batch, step, hidden)."""
    B, S, emb_dim = embed.shape
    hidden_dim = weights[0].shape[-1]
    n_layers = len(weights)
    pad = (conv_size - 1) // 2

    # Pad channels to a lane-dense 128 multiple shared by all layers.
    c_pad = _round_up(max(emb_dim, hidden_dim), 128)

    x = jnp.zeros((B, S, c_pad), jnp.bfloat16)
    x = x.at[:, :, :emb_dim].set(embed.astype(jnp.bfloat16))

    # Stack + zero-pad layer parameters; reshape weights for the im2col
    # matmul: row index = tap * C_pad + in_channel.
    w_stack = jnp.zeros((n_layers, conv_size, c_pad, c_pad), jnp.bfloat16)
    b_stack = jnp.zeros((n_layers, 1, c_pad), jnp.float32)
    for l, (w, b) in enumerate(zip(weights, biases)):
        ci, co = w.shape[1], w.shape[2]
        w_stack = w_stack.at[l, :, :ci, :co].set(w.astype(jnp.bfloat16))
        b_stack = b_stack.at[l, :, :co].set(b.astype(jnp.float32))
    w_stack = w_stack.reshape(n_layers, conv_size * c_pad, c_pad)

    lens3 = batch_lens.astype(jnp.int32).reshape(B, 1, 1)

    tile_b = _pick_tile_b(B, S, c_pad, conv_size, n_layers)

    out = pl.pallas_call(
        fused_conv_kernel,
        out_shape=jax.ShapeDtypeStruct((B, S, c_pad), jnp.float32),
        grid_spec=pltpu.PrefetchScalarGridSpec(
            num_scalar_prefetch=0,
            grid=(B // tile_b,),
            in_specs=[
                pl.BlockSpec((tile_b, S, c_pad), lambda b: (b, 0, 0)),
                pl.BlockSpec((tile_b, 1, 1), lambda b: (b, 0, 0)),
                pl.BlockSpec((n_layers, conv_size * c_pad, c_pad),
                             lambda b: (0, 0, 0)),
                pl.BlockSpec((n_layers, 1, c_pad), lambda b: (0, 0, 0)),
            ],
            out_specs=pl.BlockSpec((tile_b, S, c_pad), lambda b: (b, 0, 0)),
            scratch_shapes=[
                pltpu.VMEM((tile_b, S + 2 * pad, c_pad), jnp.bfloat16),
            ],
        ),
        compiler_params=pltpu.CompilerParams(
            dimension_semantics=("parallel",),
            vmem_limit_bytes=32 * 1024 * 1024,
        ),
    )(x, lens3, w_stack, b_stack)

    # Drop the channel padding (module returns float32 (B, S, hidden)).
    return out[:, :, :hidden_dim]


def reference_forward(embed, batch_lens, weights, biases, conv_size,
                      compute_dtype=jnp.float32):
    """Pure-JAX reference with PyTorch semantics:
    mask input -> [Conv1d + ReLU] x L (no intermediate masking) -> mask output.
    compute_dtype=bfloat16 mirrors the kernel's MXU precision."""
    pad = (conv_size - 1) // 2
    B, S, _ = embed.shape
    t = jnp.arange(S)[None, :, None]
    mask = (t < batch_lens[:, None, None]).astype(jnp.float32)
    h = embed * mask
    for w, bias in zip(weights, biases):
        w_oiw = jnp.transpose(w, (2, 1, 0)).astype(compute_dtype)   # (out,in,k)
        h_ncw = jnp.transpose(h, (0, 2, 1)).astype(compute_dtype)   # (B,C,S)
        y = jax.lax.conv_general_dilated(
            h_ncw, w_oiw, window_strides=(1,), padding=[(pad, pad)],
            dimension_numbers=("NCW", "OIW", "NCW"),
            preferred_element_type=jnp.float32)
        y = y + bias[0][None, :, None]
        h = jnp.maximum(jnp.transpose(y, (0, 2, 1)), 0.0)
    return h * mask


if __name__ == "__main__":
    # Shapes consistent with ConvLayer(emb_dim=32, hidden_dim=32,
    # num_layers=2, conv_size=5) on (batch=2, step=16, emb=32).
    emb_dim, hidden_dim, num_layers, conv_size = 32, 32, 2, 5
    batch, step = 2, 16

    key = jax.random.PRNGKey(0)
    k_x, k_w, k_b = jax.random.split(key, 3)

    embed = jax.random.normal(k_x, (batch, step, emb_dim), dtype=jnp.float32)
    batch_lens = jnp.array([16, 9], dtype=jnp.int32)  # PyTorch int64; int32 here

    # Deterministic synthetic Conv1d parameters, stored as (conv_size, in, out).
    weights, biases = [], []
    c_in = emb_dim
    for i in range(num_layers):
        kw = jax.random.fold_in(k_w, i)
        kb = jax.random.fold_in(k_b, i)
        weights.append(0.1 * jax.random.normal(
            kw, (conv_size, c_in, hidden_dim), dtype=jnp.float32))
        biases.append(0.1 * jax.random.normal(
            kb, (1, hidden_dim), dtype=jnp.float32))
        c_in = hidden_dim

    out = conv_layer_forward(embed, batch_lens, weights, biases, conv_size)
    out = jax.block_until_ready(out)

    assert out.shape == (batch, step, hidden_dim)
    assert out.dtype == jnp.float32

    # Tight check vs. a reference using the same bf16 MXU inputs / f32 acc.
    ref_bf16 = reference_forward(embed, batch_lens, weights, biases, conv_size,
                                 compute_dtype=jnp.bfloat16)
    assert jnp.allclose(out, ref_bf16, atol=2e-3, rtol=2e-3)

    # Loose check vs. the full-f32 PyTorch-equivalent reference (bf16 MXU
    # inputs are an intentional precision trade-off per the perf review).
    ref_f32 = reference_forward(embed, batch_lens, weights, biases, conv_size,
                                compute_dtype=jnp.float32)
    assert jnp.allclose(out, ref_f32, atol=5e-2, rtol=5e-2)

    print("KERNEL_OK")
</pallas_src>

<mosaic_0001>
module attributes {stable_mosaic.version = 11 : i64} {
  func.func @fused_conv_kernel(%arg0: i32, %arg1: memref<2x16x128xbf16, #tpu.memory_space<vmem>>, %arg2: memref<2x1x1xi32, #tpu.memory_space<vmem>>, %arg3: memref<2x640x128xbf16, #tpu.memory_space<vmem>>, %arg4: memref<2x1x128xf32, #tpu.memory_space<vmem>>, %arg5: memref<2x16x128xf32, #tpu.memory_space<vmem>>, %arg6: memref<2x20x128xbf16, #tpu.memory_space<vmem>>) attributes {dimension_semantics = [#tpu.dimension_semantics<parallel>], iteration_bounds = array<i64: 1>, scalar_prefetch = 0 : i64, scratch_operands = 1 : i64, tpu.core_type = #tpu.core_type<tc>, window_params = [{transform_indices = @transform_0, window_bounds = array<i64: 2, 16, 128>}, {transform_indices = @transform_1, window_bounds = array<i64: 2, 1, 1>}, {pipeline_mode = #tpu.pipeline_mode<synchronous>, transform_indices = @transform_2, window_bounds = array<i64: 2, 640, 128>}, {pipeline_mode = #tpu.pipeline_mode<synchronous>, transform_indices = @transform_3, window_bounds = array<i64: 2, 1, 128>}, {transform_indices = @transform_4, window_bounds = array<i64: 2, 16, 128>}]} {
    %0 = tpu.iota {dimensions = array<i32: 1>} : vector<2x16x1xi32>
    %c0 = arith.constant 0 : index
    %c0_0 = arith.constant 0 : index
    %c0_1 = arith.constant 0 : index
    %1 = vector.load %arg2[%c0, %c0_0, %c0_1] : memref<2x1x1xi32, #tpu.memory_space<vmem>>, vector<2x1x1xi32>
    %2 = vector.broadcast %1 : vector<2x1x1xi32> to vector<2x16x1xi32>
    %3 = arith.cmpi slt, %0, %2 : vector<2x16x1xi32>
    %cst = arith.constant 0.000000e+00 : bf16
    %4 = vector.broadcast %cst : bf16 to vector<2x20x128xbf16>
    %c0_2 = arith.constant 0 : index
    %c0_3 = arith.constant 0 : index
    %c0_4 = arith.constant 0 : index
    %5 = vector.load %arg6[%c0_2, %c0_3, %c0_4] : memref<2x20x128xbf16, #tpu.memory_space<vmem>>, vector<2x20x128xbf16>
    tpu.vector_store %arg6[%c0_2, %c0_3, %c0_4], %4 {strides = array<i32>} : memref<2x20x128xbf16, #tpu.memory_space<vmem>>, vector<2x20x128xbf16>,
    %c0_5 = arith.constant 0 : index
    %c0_6 = arith.constant 0 : index
    %c0_7 = arith.constant 0 : index
    %6 = vector.load %arg1[%c0_5, %c0_6, %c0_7] : memref<2x16x128xbf16, #tpu.memory_space<vmem>>, vector<2x16x128xbf16>
    %c0_i32 = arith.constant 0 : i32
    %7 = arith.sitofp %c0_i32 : i32 to bf16
    %8 = vector.shape_cast %3 : vector<2x16x1xi1> to vector<2x16x1xi1>
    %9 = vector.broadcast %8 : vector<2x16x1xi1> to vector<2x16x128xi1>
    %10 = vector.broadcast %7 : bf16 to vector<2x16x128xbf16>
    %11 = arith.select %9, %6, %10 : vector<2x16x128xi1>, vector<2x16x128xbf16>
    %c0_8 = arith.constant 0 : index
    %c2 = arith.constant 2 : index
    %c0_9 = arith.constant 0 : index
    %12 = vector.load %arg6[%c0_8, %c2, %c0_9] : memref<2x20x128xbf16, #tpu.memory_space<vmem>>, vector<2x16x128xbf16>
    tpu.vector_store %arg6[%c0_8, %c2, %c0_9], %11 {strides = array<i32>} : memref<2x20x128xbf16, #tpu.memory_space<vmem>>, vector<2x16x128xbf16>,
    %c0_10 = arith.constant 0 : index
    %c0_11 = arith.constant 0 : index
    %c0_12 = arith.constant 0 : index
    %13 = vector.load %arg6[%c0_10, %c0_11, %c0_12] : memref<2x20x128xbf16, #tpu.memory_space<vmem>>, vector<2x20x128xbf16>
    %14 = vector.extract_strided_slice %13 {offsets = [0, 0, 0], sizes = [2, 16, 128], strides = [1, 1, 1]} : vector<2x20x128xbf16> to vector<2x16x128xbf16>
    %15 = vector.extract_strided_slice %13 {offsets = [0, 1, 0], sizes = [2, 16, 128], strides = [1, 1, 1]} : vector<2x20x128xbf16> to vector<2x16x128xbf16>
    %16 = vector.extract_strided_slice %13 {offsets = [0, 2, 0], sizes = [2, 16, 128], strides = [1, 1, 1]} : vector<2x20x128xbf16> to vector<2x16x128xbf16>
    %17 = vector.extract_strided_slice %13 {offsets = [0, 3, 0], sizes = [2, 16, 128], strides = [1, 1, 1]} : vector<2x20x128xbf16> to vector<2x16x128xbf16>
    %18 = vector.extract_strided_slice %13 {offsets = [0, 4, 0], sizes = [2, 16, 128], strides = [1, 1, 1]} : vector<2x20x128xbf16> to vector<2x16x128xbf16>
    %19 = tpu.concatenate %14, %15, %16, %17, %18 in 2 : vector<2x16x128xbf16>, vector<2x16x128xbf16>, vector<2x16x128xbf16>, vector<2x16x128xbf16>, vector<2x16x128xbf16> -> vector<2x16x640xbf16>
    %20 = vector.shape_cast %19 : vector<2x16x640xbf16> to vector<32x640xbf16>
    %c0_13 = arith.constant 0 : index
    %c0_14 = arith.constant 0 : index
    %c0_15 = arith.constant 0 : index
    %21 = vector.load %arg3[%c0_13, %c0_14, %c0_15] : memref<2x640x128xbf16, #tpu.memory_space<vmem>>, vector<1x640x128xbf16>
    %22 = vector.shape_cast %21 : vector<1x640x128xbf16> to vector<640x128xbf16>
    %cst_16 = arith.constant dense<0.000000e+00> : vector<32x128xf32>
    %23 = tpu.matmul %20, %22, %cst_16 {dimension_numbers = #tpu.dot_dimension_numbers<[1], [0], [0], [1], [0, 0, 1, 1], [], []>} : vector<32x640xbf16>, vector<640x128xbf16>, vector<32x128xf32> -> vector<32x128xf32>
    %c0_17 = arith.constant 0 : index
    %c0_18 = arith.constant 0 : index
    %c0_19 = arith.constant 0 : index
    %24 = vector.load %arg4[%c0_17, %c0_18, %c0_19] : memref<2x1x128xf32, #tpu.memory_space<vmem>>, vector<1x1x128xf32>
    %25 = vector.shape_cast %24 : vector<1x1x128xf32> to vector<1x128xf32>
    %26 = vector.broadcast %25 : vector<1x128xf32> to vector<32x128xf32>
    %27 = arith.addf %23, %26 : vector<32x128xf32>
    %cst_20 = arith.constant 0.000000e+00 : f32
    %28 = vector.broadcast %cst_20 : f32 to vector<32x128xf32>
    %29 = arith.maximumf %27, %28 : vector<32x128xf32>
    %30 = vector.shape_cast %29 : vector<32x128xf32> to vector<2x16x128xf32>
    %31 = arith.truncf %30 : vector<2x16x128xf32> to vector<2x16x128xbf16>
    %c0_21 = arith.constant 0 : index
    %c2_22 = arith.constant 2 : index
    %c0_23 = arith.constant 0 : index
    %32 = vector.load %arg6[%c0_21, %c2_22, %c0_23] : memref<2x20x128xbf16, #tpu.memory_space<vmem>>, vector<2x16x128xbf16>
    tpu.vector_store %arg6[%c0_21, %c2_22, %c0_23], %31 {strides = array<i32>} : memref<2x20x128xbf16, #tpu.memory_space<vmem>>, vector<2x16x128xbf16>,
    %c0_24 = arith.constant 0 : index
    %c0_25 = arith.constant 0 : index
    %c0_26 = arith.constant 0 : index
    %33 = vector.load %arg6[%c0_24, %c0_25, %c0_26] : memref<2x20x128xbf16, #tpu.memory_space<vmem>>, vector<2x20x128xbf16>
    %34 = vector.extract_strided_slice %33 {offsets = [0, 0, 0], sizes = [2, 16, 128], strides = [1, 1, 1]} : vector<2x20x128xbf16> to vector<2x16x128xbf16>
    %35 = vector.extract_strided_slice %33 {offsets = [0, 1, 0], sizes = [2, 16, 128], strides = [1, 1, 1]} : vector<2x20x128xbf16> to vector<2x16x128xbf16>
    %36 = vector.extract_strided_slice %33 {offsets = [0, 2, 0], sizes = [2, 16, 128], strides = [1, 1, 1]} : vector<2x20x128xbf16> to vector<2x16x128xbf16>
    %37 = vector.extract_strided_slice %33 {offsets = [0, 3, 0], sizes = [2, 16, 128], strides = [1, 1, 1]} : vector<2x20x128xbf16> to vector<2x16x128xbf16>
    %38 = vector.extract_strided_slice %33 {offsets = [0, 4, 0], sizes = [2, 16, 128], strides = [1, 1, 1]} : vector<2x20x128xbf16> to vector<2x16x128xbf16>
    %39 = tpu.concatenate %34, %35, %36, %37, %38 in 2 : vector<2x16x128xbf16>, vector<2x16x128xbf16>, vector<2x16x128xbf16>, vector<2x16x128xbf16>, vector<2x16x128xbf16> -> vector<2x16x640xbf16>
    %40 = vector.shape_cast %39 : vector<2x16x640xbf16> to vector<32x640xbf16>
    %c1 = arith.constant 1 : index
    %c0_27 = arith.constant 0 : index
    %c0_28 = arith.constant 0 : index
    %41 = vector.load %arg3[%c1, %c0_27, %c0_28] : memref<2x640x128xbf16, #tpu.memory_space<vmem>>, vector<1x640x128xbf16>
    %42 = vector.shape_cast %41 : vector<1x640x128xbf16> to vector<640x128xbf16>
    %cst_29 = arith.constant dense<0.000000e+00> : vector<32x128xf32>
    %43 = tpu.matmul %40, %42, %cst_29 {dimension_numbers = #tpu.dot_dimension_numbers<[1], [0], [0], [1], [0, 0, 1, 1], [], []>} : vector<32x640xbf16>, vector<640x128xbf16>, vector<32x128xf32> -> vector<32x128xf32>
    %c1_30 = arith.constant 1 : index
    %c0_31 = arith.constant 0 : index
    %c0_32 = arith.constant 0 : index
    %44 = vector.load %arg4[%c1_30, %c0_31, %c0_32] : memref<2x1x128xf32, #tpu.memory_space<vmem>>, vector<1x1x128xf32>
    %45 = vector.shape_cast %44 : vector<1x1x128xf32> to vector<1x128xf32>
    %46 = vector.broadcast %45 : vector<1x128xf32> to vector<32x128xf32>
    %47 = arith.addf %43, %46 : vector<32x128xf32>
    %cst_33 = arith.constant 0.000000e+00 : f32
    %48 = vector.broadcast %cst_33 : f32 to vector<32x128xf32>
    %49 = arith.maximumf %47, %48 : vector<32x128xf32>
    %50 = vector.shape_cast %49 : vector<32x128xf32> to vector<2x16x128xf32>
    %cst_34 = arith.constant 0.000000e+00 : f32
    %51 = vector.shape_cast %3 : vector<2x16x1xi1> to vector<2x16x1xi1>
    %52 = vector.broadcast %51 : vector<2x16x1xi1> to vector<2x16x128xi1>
    %53 = vector.broadcast %cst_34 : f32 to vector<2x16x128xf32>
    %54 = arith.select %52, %50, %53 : vector<2x16x128xi1>, vector<2x16x128xf32>
    %c0_35 = arith.constant 0 : index
    %c0_36 = arith.constant 0 : index
    %c0_37 = arith.constant 0 : index
    %55 = vector.load %arg5[%c0_35, %c0_36, %c0_37] : memref<2x16x128xf32, #tpu.memory_space<vmem>>, vector<2x16x128xf32>
    tpu.vector_store %arg5[%c0_35, %c0_36, %c0_37], %54 {strides = array<i32>} : memref<2x16x128xf32, #tpu.memory_space<vmem>>, vector<2x16x128xf32>,
    return
  }
  func.func @transform_0(%arg0: i32) -> (i32, i32, i32) {
    %c0_i32 = arith.constant 0 : i32
    %c0_i32_0 = arith.constant 0 : i32
    %c0_i32_1 = arith.constant 0 : i32
    return %arg0, %c0_i32, %c0_i32_0 : i32, i32, i32
  }
  func.func @transform_1(%arg0: i32) -> (i32, i32, i32) {
    %c0_i32 = arith.constant 0 : i32
    %c0_i32_0 = arith.constant 0 : i32
    %c0_i32_1 = arith.constant 0 : i32
    return %arg0, %c0_i32, %c0_i32_0 : i32, i32, i32
  }
  func.func @transform_2(%arg0: i32) -> (i32, i32, i32) {
    %c0_i32 = arith.constant 0 : i32
    %c0_i32_0 = arith.constant 0 : i32
    %c0_i32_1 = arith.constant 0 : i32
    %c0_i32_2 = arith.constant 0 : i32
    return %c0_i32, %c0_i32_0, %c0_i32_1 : i32, i32, i32
  }
  func.func @transform_3(%arg0: i32) -> (i32, i32, i32) {
    %c0_i32 = arith.constant 0 : i32
    %c0_i32_0 = arith.constant 0 : i32
    %c0_i32_1 = arith.constant 0 : i32
    %c0_i32_2 = arith.constant 0 : i32
    return %c0_i32, %c0_i32_0, %c0_i32_1 : i32, i32, i32
  }
  func.func @transform_4(%arg0: i32) -> (i32, i32, i32) {
    %c0_i32 = arith.constant 0 : i32
    %c0_i32_0 = arith.constant 0 : i32
    %c0_i32_1 = arith.constant 0 : i32
    return %arg0, %c0_i32, %c0_i32_0 : i32, i32, i32
  }
}

</mosaic_0001>

<llo_original>
// kernel: tpu_custom_call.1
$region0: #{tpu_custom_call.1}
  #allocation0 [shape = 'u32[]', space=smem, size = 0x4, offset = 0x4, fixed_abs, tag = 'smem constant byte address 0x4 - core index']
  #allocation1 [shape = 'u32[144,128]{1,0:T(1,128)}', space=vmem, size = 0x12000, scoped, tag = 'internal scratch']
  #allocation2 [shape = 'bf16[2,20,128]{2,1,0:T(8,128)(2,1)}', space=vmem, size = 0x3000, scoped, tag = 'scratch operand']
  %s0 = inlined_call_operand.hbm [shape: bf16[2,16,128], index: 0, kind: input, shape index: {}]
  %s1 = inlined_call_operand.vmem [shape: s32[2,1,1], index: 1, kind: input, shape index: {}]
  %s2 = inlined_call_operand.hbm [shape: bf16[2,640,128], index: 2, kind: input, shape index: {}]
  %s3 = inlined_call_operand.vmem [shape: f32[2,1,128], index: 3, kind: input, shape index: {}]
  %s4 = inlined_call_operand.hbm [shape: f32[2,16,128], index: 4, kind: output, shape index: {}]
  %s5 = sld [smem:[#allocation0]]
  $region34: #{tpu_custom_call.1} parent=0
    _
  %s7 = ssub.s32 1, %s5
  %s8 = scalar_select 0, %s7, %s5
  $region1: #{tpu_custom_call.1} parent=0
    #allocation3 [shape = 'u8[8192]{0}', space=vmem, size = 0x2000, scoped, tag = 'input window, operand 0, single buffered']
    #allocation4 [shape = 's32[1]{0}', space=sflag, size = 0x4, scoped, tag = 'scoped memory for tpu_custom_call.1']
    #allocation5 [shape = 's32[1]{0}', space=sflag, size = 0x4, scoped, tag = 'scoped memory for tpu_custom_call.1']
    #allocation6 [shape = 'u8[327680]{0}', space=vmem, size = 0x50000, scoped, tag = 'input window, operand 2, single buffered']
    #allocation7 [shape = 's32[1]{0}', space=sflag, size = 0x4, scoped, tag = 'scoped memory for tpu_custom_call.1']
    #allocation8 [shape = 'u8[16384]{0}', space=vmem, size = 0x4000, scoped, tag = 'output window, operand 0, single buffered']
    %9 = vsyncpa [#allocation4], 0
    %10 = vsyncpa [#allocation7], 0
    %11 = vsyncpa [#allocation5], 0
    // Predicated region
    $region2: #{tpu_custom_call.1} parent=1 // pred_check
      _
    $region3: #{tpu_custom_call.1} parent=1 // pred_check_branch
      %13 = sbr.rel (0) target = $region5
    $region4: #{tpu_custom_call.1} parent=1 // pred_region
      %s15 = ssub.s32 256, 256
      %16 = vsyncadd [#allocation4], %s15
      %s17 = sshll.u32 [#allocation3], 4
      %s18 = int_to_ptr.vmem [resolvable:$true] %s17
      %23 = dma.hbm_to_vmem [thread:$0]  %s0, 256, %s18, [#allocation4], 64, 64, 4
    $region5: #{tpu_custom_call.1} parent=1 // pred_fallthru
      _
    // Predicated region
    $region6: #{tpu_custom_call.1} parent=1 // pred_check
      _
    $region7: #{tpu_custom_call.1} parent=1 // pred_check_branch
      %25 = sbr.rel (0) target = $region9
    $region8: #{tpu_custom_call.1} parent=1 // pred_region
      _
    $region9: #{tpu_custom_call.1} parent=1 // pred_fallthru
      _
    // Predicated region
    $region10: #{tpu_custom_call.1} parent=1 // pred_check
      _
    $region11: #{tpu_custom_call.1} parent=1 // pred_check_branch
      %27 = sbr.rel (0) target = $region13
    $region12: #{tpu_custom_call.1} parent=1 // pred_region
      %s29 = ssub.s32 10240, 10240
      %30 = vsyncadd [#allocation7], %s29
      %s31 = sshll.u32 [#allocation6], 4
      %s32 = int_to_ptr.vmem [resolvable:$true] %s31
      %37 = dma.hbm_to_vmem [thread:$0]  %s2, 10240, %s32, [#allocation7], 64, 64, 4
    $region13: #{tpu_custom_call.1} parent=1 // pred_fallthru
      _
    // Predicated region
    $region14: #{tpu_custom_call.1} parent=1 // pred_check
      _
    $region15: #{tpu_custom_call.1} parent=1 // pred_check_branch
      %39 = sbr.rel (0) target = $region17
    $region16: #{tpu_custom_call.1} parent=1 // pred_region
      _
    $region17: #{tpu_custom_call.1} parent=1 // pred_fallthru
      _
    // Predicated region
    $region18: #{tpu_custom_call.1} parent=1 // pred_check
      _
    $region19: #{tpu_custom_call.1} parent=1 // pred_check_branch
      %41 = sbr.rel (0) target = $region21
    $region20: #{tpu_custom_call.1} parent=1 // pred_region
      %42 = dma.done [#allocation4], 256
    $region21: #{tpu_custom_call.1} parent=1 // pred_fallthru
      _
    // Predicated region
    $region22: #{tpu_custom_call.1} parent=1 // pred_check
      _
    $region23: #{tpu_custom_call.1} parent=1 // pred_check_branch
      %44 = sbr.rel (0) target = $region25
    $region24: #{tpu_custom_call.1} parent=1 // pred_region
      %45 = dma.done [#allocation7], 10240
    $region25: #{tpu_custom_call.1} parent=1 // pred_fallthru
      _
    %v47 = vlaneseq
    %v48 = vshrl.u32 %v47, 7
    %v49 = vadd.s32 %v48, 8
    %v50 = vld [vmem:[%s1] sm:$0x1]
    %v51 = vld [vmem:[%s1 + $0x1] sm:$0x1]
    %v52 = vlaneseq
    %v53 = vshrl.u32 %v52, 7
    %v54 = vsub.s32 0, %v53
    %v55 = vrot.slane %v50, %v54
    %v56 = vlaneseq
    %v57 = vshrl.u32 %v56, 7
    %v58 = vsub.s32 0, %v57
    %v59 = vrot.slane %v51, %v58
    %vm60 = vcmp.lt.s32.totalorder %v48, %v55
    %vm61 = vcmp.lt.s32.totalorder %v49, %v55
    %vm62 = vcmp.lt.s32.totalorder %v48, %v59
    %vm63 = vcmp.lt.s32.totalorder %v49, %v59
    %64 = vst [vmem:[#allocation2] sm:$0xf] 0
    %65 = vst [vmem:[#allocation2 + $0x4] sm:$0xf] 0
    %66 = vst [vmem:[#allocation2 + $0x8] sm:$0x3] 0
    %67 = vst [vmem:[#allocation2 + $0xc] sm:$0xf] 0
    %68 = vst [vmem:[#allocation2 + $0x10] sm:$0xf] 0
    %69 = vst [vmem:[#allocation2 + $0x14] sm:$0x3] 0
    %v70 = vld [vmem:[#allocation3] sm:$0xf]
    %v71 = vld [vmem:[#allocation3 + $0x4] sm:$0xf]
    %v72 = vld [vmem:[#allocation3 + $0x8] sm:$0xf]
    %v73 = vld [vmem:[#allocation3 + $0xc] sm:$0xf]
    %v74 = vsel %vm60, 1, 0
    %v75 = vsel %vm61, 1, 0
    %v76 = vsel %vm62, 1, 0
    %v77 = vsel %vm63, 1, 0
    %78 = vset.pattern.permute.xlu0 0
    %79 = vperm.xlu0 %78, %v74
    %v80 = vpop.permute.xlu0 %79
    %81 = vset.pattern.permute.xlu0 0
    %82 = vperm.xlu0 %81, %v75
    %v83 = vpop.permute.xlu0 %82
    %84 = vset.pattern.permute.xlu0 0
    %85 = vperm.xlu0 %84, %v76
    %v86 = vpop.permute.xlu0 %85
    %87 = vset.pattern.permute.xlu0 0
    %88 = vperm.xlu0 %87, %v77
    %v89 = vpop.permute.xlu0 %88
    %vm90 = vcmp.eq.s32.totalorder %v80, 1
    %vm91 = vcmp.eq.s32.totalorder %v83, 1
    %vm92 = vcmp.eq.s32.totalorder %v86, 1
    %vm93 = vcmp.eq.s32.totalorder %v89, 1
    %vm94 = vmpackc.low %vm90, %vm90
    %vm95 = vmpackc.low %vm91, %vm91
    %vm96 = vmpackc.low %vm92, %vm92
    %vm97 = vmpackc.low %vm93, %vm93
    %v98 = vsel %vm94, %v70, 0
    %v99 = vsel %vm95, %v71, 0
    %v100 = vsel %vm96, %v72, 0
    %v101 = vsel %vm97, %v73, 0
    %vm106 = vcmask 1040384
    %vm107 = vcmask 1044484
    %vm108 = vmor %vm106, %vm107
    %v109 = vrot.slane %v98, 7
    %v110 = vrot.slane %v109, 4
    %v111 = vrot.slane %v99, 7
    %v112 = vsel %vm108, %v110, %v111
    %v113 = vrot.slane %v111, 4
    %v114 = vrot.slane %v100, 7
    %v115 = vrot.slane %v114, 4
    %v116 = vrot.slane %v101, 7
    %v117 = vsel %vm108, %v115, %v116
    %v118 = vrot.slane %v116, 4
    %125 = vst [vmem:[#allocation2] sm:$0xe] %v109
    %126 = vst [vmem:[#allocation2 + $0x4] sm:$0xf] %v112
    %127 = vst [vmem:[#allocation2 + $0x8] sm:$0x1] %v113
    %128 = vst [vmem:[#allocation2 + $0xc] sm:$0xe] %v114
    %129 = vst [vmem:[#allocation2 + $0x10] sm:$0xf] %v117
    %130 = vst [vmem:[#allocation2 + $0x14] sm:$0x1] %v118
    %v131 = vld [vmem:[#allocation2] sm:$0xf]
    %v132 = vld [vmem:[#allocation2 + $0x4] sm:$0xf]
    %v133 = vld [vmem:[#allocation2 + $0x8] sm:$0x3]
    %v134 = vld [vmem:[#allocation2 + $0xc] sm:$0xf]
    %v135 = vld [vmem:[#allocation2 + $0x10] sm:$0xf]
    %v136 = vld [vmem:[#allocation2 + $0x14] sm:$0x3]
    %v141 = vunpack.c.l.b16 %v131
    %v142 = vunpack.c.l.b16 %v132
    %v143 = vunpack.c.l.b16 %v134
    %v144 = vunpack.c.l.b16 %v135
    %v145 = vpack.c.b16 %v142, %v141
    %v146 = vpack.c.b16 %v144, %v143
    %v151 = vunpack.c.l.b16 %v133
    %v152 = vunpack.c.l.b16 %v136
    %v153 = vpack.c.b16 %v151, %v151
    %v154 = vpack.c.b16 %v152, %v152
    %vm155 = vsmask.f32 7424
    %v157 = vshrl.u32 %v145, 16
    %v159 = vshll.u32 %v145, 16
    %v161 = vrot.slane %v159, 1
    %v162 = vor.u32 %v157, %v161
    %v164 = vshll.u32 %v153, 16
    %v166 = vrot.slane %v164, 1
    %v167 = vsel %vm155, %v162, %v166
    %v169 = vshrl.u32 %v146, 16
    %v171 = vshll.u32 %v146, 16
    %v173 = vrot.slane %v171, 1
    %v174 = vor.u32 %v169, %v173
    %v176 = vshll.u32 %v154, 16
    %v178 = vrot.slane %v176, 1
    %v179 = vsel %vm155, %v174, %v178
    %vm182 = vcmask 1046528
    %v183 = vrot.slane %v145, 1
    %v184 = vrot.slane %v153, 1
    %v185 = vsel %vm182, %v183, %v184
    %v186 = vrot.slane %v146, 1
    %v187 = vrot.slane %v154, 1
    %v188 = vsel %vm182, %v186, %v187
    %vm191 = vsmask.f32 6400
    %v192 = vrot.slane %v157, 1
    %v193 = vrot.slane %v159, 2
    %v194 = vor.u32 %v192, %v193
    %v195 = vshrl.u32 %v153, 16
    %v197 = vrot.slane %v195, 1
    %v198 = vrot.slane %v164, 2
    %v199 = vor.u32 %v197, %v198
    %v200 = vsel %vm191, %v194, %v199
    %v201 = vrot.slane %v169, 1
    %v202 = vrot.slane %v171, 2
    %v203 = vor.u32 %v201, %v202
    %v204 = vshrl.u32 %v154, 16
    %v206 = vrot.slane %v204, 1
    %v207 = vrot.slane %v176, 2
    %v208 = vor.u32 %v206, %v207
    %v209 = vsel %vm191, %v203, %v208
    %vm212 = vcmask 1045504
    %v213 = vrot.slane %v145, 2
    %v214 = vrot.slane %v153, 2
    %v215 = vsel %vm212, %v213, %v214
    %v216 = vrot.slane %v146, 2
    %v217 = vrot.slane %v154, 2
    %v218 = vsel %vm212, %v216, %v217
    %v221 = vld [vmem:[#allocation6] sm:$0xf]
    %v222 = vld [vmem:[#allocation6 + $0x4] sm:$0xf]
    %v223 = vld [vmem:[#allocation6 + $0x8] sm:$0xf]
    %v224 = vld [vmem:[#allocation6 + $0xc] sm:$0xf]
    %v225 = vld [vmem:[#allocation6 + $0x10] sm:$0xf]
    %v226 = vld [vmem:[#allocation6 + $0x14] sm:$0xf]
    %v227 = vld [vmem:[#allocation6 + $0x18] sm:$0xf]
    %v228 = vld [vmem:[#allocation6 + $0x1c] sm:$0xf]
    %v229 = vld [vmem:[#allocation6 + $0x20] sm:$0xf]
    %v230 = vld [vmem:[#allocation6 + $0x24] sm:$0xf]
    %v231 = vld [vmem:[#allocation6 + $0x28] sm:$0xf]
    %v232 = vld [vmem:[#allocation6 + $0x2c] sm:$0xf]
    %v233 = vld [vmem:[#allocation6 + $0x30] sm:$0xf]
    %v234 = vld [vmem:[#allocation6 + $0x34] sm:$0xf]
    %v235 = vld [vmem:[#allocation6 + $0x38] sm:$0xf]
    %v236 = vld [vmem:[#allocation6 + $0x3c] sm:$0xf]
    %v237 = vld [vmem:[#allocation6 + $0x40] sm:$0xf]
    %v238 = vld [vmem:[#allocation6 + $0x44] sm:$0xf]
    %v239 = vld [vmem:[#allocation6 + $0x48] sm:$0xf]
    %v240 = vld [vmem:[#allocation6 + $0x4c] sm:$0xf]
    %v241 = vld [vmem:[#allocation6 + $0x50] sm:$0xf]
    %v242 = vld [vmem:[#allocation6 + $0x54] sm:$0xf]
    %v243 = vld [vmem:[#allocation6 + $0x58] sm:$0xf]
    %v244 = vld [vmem:[#allocation6 + $0x5c] sm:$0xf]
    %v245 = vld [vmem:[#allocation6 + $0x60] sm:$0xf]
    %v246 = vld [vmem:[#allocation6 + $0x64] sm:$0xf]
    %v247 = vld [vmem:[#allocation6 + $0x68] sm:$0xf]
    %v248 = vld [vmem:[#allocation6 + $0x6c] sm:$0xf]
    %v249 = vld [vmem:[#allocation6 + $0x70] sm:$0xf]
    %v250 = vld [vmem:[#allocation6 + $0x74] sm:$0xf]
    %v251 = vld [vmem:[#allocation6 + $0x78] sm:$0xf]
    %v252 = vld [vmem:[#allocation6 + $0x7c] sm:$0xf]
    %v253 = vld [vmem:[#allocation6 + $0x80] sm:$0xf]
    %v254 = vld [vmem:[#allocation6 + $0x84] sm:$0xf]
    %v255 = vld [vmem:[#allocation6 + $0x88] sm:$0xf]
    %v256 = vld [vmem:[#allocation6 + $0x8c] sm:$0xf]
    %v257 = vld [vmem:[#allocation6 + $0x90] sm:$0xf]
    %v258 = vld [vmem:[#allocation6 + $0x94] sm:$0xf]
    %v259 = vld [vmem:[#allocation6 + $0x98] sm:$0xf]
    %v260 = vld [vmem:[#allocation6 + $0x9c] sm:$0xf]
    %v261 = vld [vmem:[#allocation6 + $0xa0] sm:$0xf]
    %v262 = vld [vmem:[#allocation6 + $0xa4] sm:$0xf]
    %v263 = vld [vmem:[#allocation6 + $0xa8] sm:$0xf]
    %v264 = vld [vmem:[#allocation6 + $0xac] sm:$0xf]
    %v265 = vld [vmem:[#allocation6 + $0xb0] sm:$0xf]
    %v266 = vld [vmem:[#allocation6 + $0xb4] sm:$0xf]
    %v267 = vld [vmem:[#allocation6 + $0xb8] sm:$0xf]
    %v268 = vld [vmem:[#allocation6 + $0xbc] sm:$0xf]
    %v269 = vld [vmem:[#allocation6 + $0xc0] sm:$0xf]
    %v270 = vld [vmem:[#allocation6 + $0xc4] sm:$0xf]
    %v271 = vld [vmem:[#allocation6 + $0xc8] sm:$0xf]
    %v272 = vld [vmem:[#allocation6 + $0xcc] sm:$0xf]
    %v273 = vld [vmem:[#allocation6 + $0xd0] sm:$0xf]
    %v274 = vld [vmem:[#allocation6 + $0xd4] sm:$0xf]
    %v275 = vld [vmem:[#allocation6 + $0xd8] sm:$0xf]
    %v276 = vld [vmem:[#allocation6 + $0xdc] sm:$0xf]
    %v277 = vld [vmem:[#allocation6 + $0xe0] sm:$0xf]
    %v278 = vld [vmem:[#allocation6 + $0xe4] sm:$0xf]
    %v279 = vld [vmem:[#allocation6 + $0xe8] sm:$0xf]
    %v280 = vld [vmem:[#allocation6 + $0xec] sm:$0xf]
    %v281 = vld [vmem:[#allocation6 + $0xf0] sm:$0xf]
    %v282 = vld [vmem:[#allocation6 + $0xf4] sm:$0xf]
    %v283 = vld [vmem:[#allocation6 + $0xf8] sm:$0xf]
    %v284 = vld [vmem:[#allocation6 + $0xfc] sm:$0xf]
    %v285 = vld [vmem:[#allocation6 + $0x100] sm:$0xf]
    %v286 = vld [vmem:[#allocation6 + $0x104] sm:$0xf]
    %v287 = vld [vmem:[#allocation6 + $0x108] sm:$0xf]
    %v288 = vld [vmem:[#allocation6 + $0x10c] sm:$0xf]
    %v289 = vld [vmem:[#allocation6 + $0x110] sm:$0xf]
    %v290 = vld [vmem:[#allocation6 + $0x114] sm:$0xf]
    %v291 = vld [vmem:[#allocation6 + $0x118] sm:$0xf]
    %v292 = vld [vmem:[#allocation6 + $0x11c] sm:$0xf]
    %v293 = vld [vmem:[#allocation6 + $0x120] sm:$0xf]
    %v294 = vld [vmem:[#allocation6 + $0x124] sm:$0xf]
    %v295 = vld [vmem:[#allocation6 + $0x128] sm:$0xf]
    %v296 = vld [vmem:[#allocation6 + $0x12c] sm:$0xf]
    %v297 = vld [vmem:[#allocation6 + $0x130] sm:$0xf]
    %v298 = vld [vmem:[#allocation6 + $0x134] sm:$0xf]
    %v299 = vld [vmem:[#allocation6 + $0x138] sm:$0xf]
    %v300 = vld [vmem:[#allocation6 + $0x13c] sm:$0xf]
    %v301 = vld [vmem:[%s3] sm:$0x1]
    %v303 = vlaneseq
    %v304 = vshrl.u32 %v303, 7
    %v305 = vsub.s32 0, %v304
    %v306 = vrot.slane %v301, %v305
    %v388 = vunpack.c.l.b16 %v221
    %v389 = vunpack.c.l.b16 %v222
    %v390 = vunpack.c.l.b16 %v223
    %v391 = vunpack.c.l.b16 %v224
    %v392 = vunpack.c.l.b16 %v225
    %v393 = vunpack.c.l.b16 %v226
    %v394 = vunpack.c.l.b16 %v227
    %v395 = vunpack.c.l.b16 %v228
    %v396 = vunpack.c.l.b16 %v229
    %v397 = vunpack.c.l.b16 %v230
    %v398 = vunpack.c.l.b16 %v231
    %v399 = vunpack.c.l.b16 %v232
    %v400 = vunpack.c.l.b16 %v233
    %v401 = vunpack.c.l.b16 %v234
    %v402 = vunpack.c.l.b16 %v235
    %v403 = vunpack.c.l.b16 %v236
    %v404 = vunpack.c.l.b16 %v237
    %v405 = vunpack.c.l.b16 %v238
    %v406 = vunpack.c.l.b16 %v239
    %v407 = vunpack.c.l.b16 %v240
    %v408 = vunpack.c.l.b16 %v241
    %v409 = vunpack.c.l.b16 %v242
    %v410 = vunpack.c.l.b16 %v243
    %v411 = vunpack.c.l.b16 %v244
    %v412 = vunpack.c.l.b16 %v245
    %v413 = vunpack.c.l.b16 %v246
    %v414 = vunpack.c.l.b16 %v247
    %v415 = vunpack.c.l.b16 %v248
    %v416 = vunpack.c.l.b16 %v249
    %v417 = vunpack.c.l.b16 %v250
    %v418 = vunpack.c.l.b16 %v251
    %v419 = vunpack.c.l.b16 %v252
    %v420 = vunpack.c.l.b16 %v253
    %v421 = vunpack.c.l.b16 %v254
    %v422 = vunpack.c.l.b16 %v255
    %v423 = vunpack.c.l.b16 %v256
    %v424 = vunpack.c.l.b16 %v257
    %v425 = vunpack.c.l.b16 %v258
    %v426 = vunpack.c.l.b16 %v259
    %v427 = vunpack.c.l.b16 %v260
    %v428 = vunpack.c.l.b16 %v261
    %v429 = vunpack.c.l.b16 %v262
    %v430 = vunpack.c.l.b16 %v263
    %v431 = vunpack.c.l.b16 %v264
    %v432 = vunpack.c.l.b16 %v265
    %v433 = vunpack.c.l.b16 %v266
    %v434 = vunpack.c.l.b16 %v267
    %v435 = vunpack.c.l.b16 %v268
    %v436 = vunpack.c.l.b16 %v269
    %v437 = vunpack.c.l.b16 %v270
    %v438 = vunpack.c.l.b16 %v271
    %v439 = vunpack.c.l.b16 %v272
    %v440 = vunpack.c.l.b16 %v273
    %v441 = vunpack.c.l.b16 %v274
    %v442 = vunpack.c.l.b16 %v275
    %v443 = vunpack.c.l.b16 %v276
    %v444 = vunpack.c.l.b16 %v277
    %v445 = vunpack.c.l.b16 %v278
    %v446 = vunpack.c.l.b16 %v279
    %v447 = vunpack.c.l.b16 %v280
    %v448 = vunpack.c.l.b16 %v281
    %v449 = vunpack.c.l.b16 %v282
    %v450 = vunpack.c.l.b16 %v283
    %v451 = vunpack.c.l.b16 %v284
    %v452 = vunpack.c.l.b16 %v285
    %v453 = vunpack.c.l.b16 %v286
    %v454 = vunpack.c.l.b16 %v287
    %v455 = vunpack.c.l.b16 %v288
    %v456 = vunpack.c.l.b16 %v289
    %v457 = vunpack.c.l.b16 %v290
    %v458 = vunpack.c.l.b16 %v291
    %v459 = vunpack.c.l.b16 %v292
    %v460 = vunpack.c.l.b16 %v293
    %v461 = vunpack.c.l.b16 %v294
    %v462 = vunpack.c.l.b16 %v295
    %v463 = vunpack.c.l.b16 %v296
    %v464 = vunpack.c.l.b16 %v297
    %v465 = vunpack.c.l.b16 %v298
    %v466 = vunpack.c.l.b16 %v299
    %v467 = vunpack.c.l.b16 %v300
    %v468 = vpack.c.b16 %v389, %v388
    %v469 = vpack.c.b16 %v391, %v390
    %v470 = vpack.c.b16 %v393, %v392
    %v471 = vpack.c.b16 %v395, %v394
    %v472 = vpack.c.b16 %v397, %v396
    %v473 = vpack.c.b16 %v399, %v398
    %v474 = vpack.c.b16 %v401, %v400
    %v475 = vpack.c.b16 %v403, %v402
    %v476 = vpack.c.b16 %v405, %v404
    %v477 = vpack.c.b16 %v407, %v406
    %v478 = vpack.c.b16 %v409, %v408
    %v479 = vpack.c.b16 %v411, %v410
    %v480 = vpack.c.b16 %v413, %v412
    %v481 = vpack.c.b16 %v415, %v414
    %v482 = vpack.c.b16 %v417, %v416
    %v483 = vpack.c.b16 %v419, %v418
    %v484 = vpack.c.b16 %v421, %v420
    %v485 = vpack.c.b16 %v423, %v422
    %v486 = vpack.c.b16 %v425, %v424
    %v487 = vpack.c.b16 %v427, %v426
    %v488 = vpack.c.b16 %v429, %v428
    %v489 = vpack.c.b16 %v431, %v430
    %v490 = vpack.c.b16 %v433, %v432
    %v491 = vpack.c.b16 %v435, %v434
    %v492 = vpack.c.b16 %v437, %v436
    %v493 = vpack.c.b16 %v439, %v438
    %v494 = vpack.c.b16 %v441, %v440
    %v495 = vpack.c.b16 %v443, %v442
    %v496 = vpack.c.b16 %v445, %v444
    %v497 = vpack.c.b16 %v447, %v446
    %v498 = vpack.c.b16 %v449, %v448
    %v499 = vpack.c.b16 %v451, %v450
    %v500 = vpack.c.b16 %v453, %v452
    %v501 = vpack.c.b16 %v455, %v454
    %v502 = vpack.c.b16 %v457, %v456
    %v503 = vpack.c.b16 %v459, %v458
    %v504 = vpack.c.b16 %v461, %v460
    %v505 = vpack.c.b16 %v463, %v462
    %v506 = vpack.c.b16 %v465, %v464
    %v507 = vpack.c.b16 %v467, %v466
    %548 = vmatprep.subr.bf16.mxu0 0
    %549 = vmatpush1.bf16.msra.mxu0 %v468
    %550 = vmatprep.subr.bf16.mxu0 0
    %551 = vmatpush1.bf16.msra.mxu0 %v469
    %552 = vmatprep.subr.bf16.mxu0 0
    %553 = vmatpush1.bf16.msra.mxu0 %v470
    %554 = vmatprep.subr.bf16.mxu0 0
    %555 = vmatpush1.bf16.msra.mxu0 %v471
    %556 = vmatprep.subr.bf16.mxu0 0
    %557 = vmatpush1.bf16.msra.mxu0 %v472
    %558 = vmatprep.subr.bf16.mxu0 0
    %559 = vmatpush1.bf16.msra.mxu0 %v473
    %560 = vmatprep.subr.bf16.mxu0 0
    %561 = vmatpush1.bf16.msra.mxu0 %v474
    %562 = vmatprep.subr.bf16.mxu0 0
    %563 = vmatpush1.bf16.msra.mxu0 %v475
    %564 = vmatprep.subr.bf16.mxu0 0
    %565 = vmatpush1.bf16.msra.mxu0 %v476
    %566 = vmatprep.subr.bf16.mxu0 0
    %567 = vmatpush1.bf16.msra.mxu0 %v477
    %568 = vmatprep.subr.bf16.mxu0 0
    %569 = vmatpush1.bf16.msra.mxu0 %v478
    %570 = vmatprep.subr.bf16.mxu0 0
    %571 = vmatpush1.bf16.msra.mxu0 %v479
    %572 = vmatprep.subr.bf16.mxu0 0
    %573 = vmatpush1.bf16.msra.mxu0 %v480
    %574 = vmatprep.subr.bf16.mxu0 0
    %575 = vmatpush1.bf16.msra.mxu0 %v481
    %576 = vmatprep.subr.bf16.mxu0 0
    %577 = vmatpush1.bf16.msra.mxu0 %v482
    %578 = vmatprep.subr.bf16.mxu0 0
    %579 = vmatpush1.bf16.msra.mxu0 %v483
    %580 = vmatprep.mubr.bf16.mxu0 %v167
    %581 = vmatmul.mubr.bf16.gmra.mrb[0].mxu0 %v145
    %v582 = vpop.f32.mrb[0].mxu0
    %v583 = vadd.f32 %v306, %v582
    %v584 = vpop.f32.mrb[0].mxu0
    %v585 = vpop.f32.mrb[0].mxu0
    %v586 = vadd.f32 %v306, %v585
    %v587 = vpop.f32.mrb[0].mxu0
    %588 = vmatprep.mubr.bf16.mxu0 %v179
    %589 = vmatmul.mubr.bf16.gmra.mrb[0].mxu0 %v146
    %v590 = vpop.f32.mrb[0].mxu0
    %v591 = vadd.f32 %v306, %v590
    %v592 = vpop.f32.mrb[0].mxu0
    %v593 = vpop.f32.mrb[0].mxu0
    %v594 = vadd.f32 %v306, %v593
    %v595 = vpop.f32.mrb[0].mxu0
    %596 = vdwg.mxu0
    %597 = vmatprep.subr.bf16.mxu0 0
    %598 = vmatpush1.bf16.msra.mxu0 %v484
    %599 = vmatprep.subr.bf16.mxu0 0
    %600 = vmatpush1.bf16.msra.mxu0 %v485
    %601 = vmatprep.subr.bf16.mxu0 0
    %602 = vmatpush1.bf16.msra.mxu0 %v486
    %603 = vmatprep.subr.bf16.mxu0 0
    %604 = vmatpush1.bf16.msra.mxu0 %v487
    %605 = vmatprep.subr.bf16.mxu0 0
    %606 = vmatpush1.bf16.msra.mxu0 %v488
    %607 = vmatprep.subr.bf16.mxu0 0
    %608 = vmatpush1.bf16.msra.mxu0 %v489
    %609 = vmatprep.subr.bf16.mxu0 0
    %610 = vmatpush1.bf16.msra.mxu0 %v490
    %611 = vmatprep.subr.bf16.mxu0 0
    %612 = vmatpush1.bf16.msra.mxu0 %v491
    %613 = vmatprep.subr.bf16.mxu0 0
    %614 = vmatpush1.bf16.msra.mxu0 %v492
    %615 = vmatprep.subr.bf16.mxu0 0
    %616 = vmatpush1.bf16.msra.mxu0 %v493
    %617 = vmatprep.subr.bf16.mxu0 0
    %618 = vmatpush1.bf16.msra.mxu0 %v494
    %619 = vmatprep.subr.bf16.mxu0 0
    %620 = vmatpush1.bf16.msra.mxu0 %v495
    %621 = vmatprep.subr.bf16.mxu0 0
    %622 = vmatpush1.bf16.msra.mxu0 %v496
    %623 = vmatprep.subr.bf16.mxu0 0
    %624 = vmatpush1.bf16.msra.mxu0 %v497
    %625 = vmatprep.subr.bf16.mxu0 0
    %626 = vmatpush1.bf16.msra.mxu0 %v498
    %627 = vmatprep.subr.bf16.mxu0 0
    %628 = vmatpush1.bf16.msra.mxu0 %v499
    %629 = vmatprep.mubr.bf16.mxu0 %v200
    %630 = vmatmul.mubr.bf16.gmra.mrb[0].mxu0 %v185
    %v631 = vpop.f32.mrb[0].mxu0
    %v632 = vadd.f32 %v583, %v631
    %v633 = vpop.f32.mrb[0].mxu0
    %v634 = vpop.f32.mrb[0].mxu0
    %v635 = vadd.f32 %v586, %v634
    %v636 = vpop.f32.mrb[0].mxu0
    %637 = vmatprep.mubr.bf16.mxu0 %v209
    %638 = vmatmul.mubr.bf16.gmra.mrb[0].mxu0 %v188
    %v639 = vpop.f32.mrb[0].mxu0
    %v640 = vadd.f32 %v591, %v639
    %v641 = vpop.f32.mrb[0].mxu0
    %v642 = vpop.f32.mrb[0].mxu0
    %v643 = vadd.f32 %v594, %v642
    %v644 = vpop.f32.mrb[0].mxu0
    %645 = vdwg.mxu0
    %646 = vmatprep.subr.bf16.mxu0 0
    %647 = vmatpush1.bf16.msra.mxu0 %v500
    %648 = vmatprep.subr.bf16.mxu0 0
    %649 = vmatpush1.bf16.msra.mxu0 %v501
    %650 = vmatprep.subr.bf16.mxu0 0
    %651 = vmatpush1.bf16.msra.mxu0 %v502
    %652 = vmatprep.subr.bf16.mxu0 0
    %653 = vmatpush1.bf16.msra.mxu0 %v503
    %654 = vmatprep.subr.bf16.mxu0 0
    %655 = vmatpush1.bf16.msra.mxu0 %v504
    %656 = vmatprep.subr.bf16.mxu0 0
    %657 = vmatpush1.bf16.msra.mxu0 %v505
    %658 = vmatprep.subr.bf16.mxu0 0
    %659 = vmatpush1.bf16.msra.mxu0 %v506
    %660 = vmatprep.subr.bf16.mxu0 0
    %661 = vmatpush1.bf16.msra.mxu0 %v507
    %662 = vmatprep.subr.bf16.mxu0 0
    %663 = vmatpush1.bf16.msra.mxu0 0
    %664 = vmatprep.subr.bf16.mxu0 0
    %665 = vmatpush1.bf16.msra.mxu0 0
    %666 = vmatprep.subr.bf16.mxu0 0
    %667 = vmatpush1.bf16.msra.mxu0 0
    %668 = vmatprep.subr.bf16.mxu0 0
    %669 = vmatpush1.bf16.msra.mxu0 0
    %670 = vmatprep.subr.bf16.mxu0 0
    %671 = vmatpush1.bf16.msra.mxu0 0
    %672 = vmatprep.subr.bf16.mxu0 0
    %673 = vmatpush1.bf16.msra.mxu0 0
    %674 = vmatprep.subr.bf16.mxu0 0
    %675 = vmatpush1.bf16.msra.mxu0 0
    %676 = vmatprep.subr.bf16.mxu0 0
    %677 = vmatpush1.bf16.msra.mxu0 0
    %678 = vmatprep.mubr.bf16.mxu0 0
    %679 = vmatmul.mubr.bf16.gmra.mrb[0].mxu0 %v215
    %v680 = vpop.f32.mrb[0].mxu0
    %v681 = vadd.f32 %v632, %v680
    %v682 = vpop.f32.mrb[0].mxu0
    %v683 = vpop.f32.mrb[0].mxu0
    %v684 = vadd.f32 %v635, %v683
    %v685 = vpop.f32.mrb[0].mxu0
    %686 = vmatprep.mubr.bf16.mxu0 0
    %687 = vmatmul.mubr.bf16.gmra.mrb[0].mxu0 %v218
    %v688 = vpop.f32.mrb[0].mxu0
    %v689 = vadd.f32 %v640, %v688
    %v690 = vpop.f32.mrb[0].mxu0
    %v691 = vpop.f32.mrb[0].mxu0
    %v692 = vadd.f32 %v643, %v691
    %v693 = vpop.f32.mrb[0].mxu0
    %694 = vdwg.mxu0
    %v695 = vmax.f32 %v681, 0.0
    %v696 = vmax.f32 %v684, 0.0
    %v697 = vmax.f32 %v689, 0.0
    %v698 = vmax.f32 %v692, 0.0
    %v699 = vpack.c.bf16 %v696, %v695
    %v700 = vpack.c.bf16 %v698, %v697
    %v703 = vunpack.c.l.b16 %v699
    %v704 = vunpack.c.h.b16 %v699
    %v705 = vunpack.c.l.b16 %v700
    %v706 = vunpack.c.h.b16 %v700
    %v707 = vpack.c.b16 %v703, %v703
    %v708 = vpack.c.b16 %v704, %v704
    %v709 = vpack.c.b16 %v705, %v705
    %v710 = vpack.c.b16 %v706, %v706
    %v711 = vrot.slane %v707, 7
    %v712 = vrot.slane %v711, 4
    %v713 = vrot.slane %v708, 7
    %v714 = vsel %vm108, %v712, %v713
    %v715 = vrot.slane %v713, 4
    %v716 = vrot.slane %v709, 7
    %v717 = vrot.slane %v716, 4
    %v718 = vrot.slane %v710, 7
    %v719 = vsel %vm108, %v717, %v718
    %v720 = vrot.slane %v718, 4
    %727 = vst [vmem:[#allocation2] sm:$0xe] %v711
    %728 = vst [vmem:[#allocation2 + $0x4] sm:$0xf] %v714
    %729 = vst [vmem:[#allocation2 + $0x8] sm:$0x1] %v715
    %730 = vst [vmem:[#allocation2 + $0xc] sm:$0xe] %v716
    %731 = vst [vmem:[#allocation2 + $0x10] sm:$0xf] %v719
    %732 = vst [vmem:[#allocation2 + $0x14] sm:$0x1] %v720
    %v733 = vld [vmem:[#allocation2] sm:$0xf]
    %v734 = vld [vmem:[#allocation2 + $0x4] sm:$0xf]
    %v735 = vld [vmem:[#allocation2 + $0x8] sm:$0x3]
    %v736 = vld [vmem:[#allocation2 + $0xc] sm:$0xf]
    %v737 = vld [vmem:[#allocation2 + $0x10] sm:$0xf]
    %v738 = vld [vmem:[#allocation2 + $0x14] sm:$0x3]
    %v743 = vunpack.c.l.b16 %v733
    %v744 = vunpack.c.l.b16 %v734
    %v745 = vunpack.c.l.b16 %v736
    %v746 = vunpack.c.l.b16 %v737
    %v747 = vpack.c.b16 %v744, %v743
    %v748 = vpack.c.b16 %v746, %v745
    %v753 = vunpack.c.l.b16 %v735
    %v754 = vunpack.c.l.b16 %v738
    %v755 = vpack.c.b16 %v753, %v753
    %v756 = vpack.c.b16 %v754, %v754
    %v758 = vshrl.u32 %v747, 16
    %v760 = vshll.u32 %v747, 16
    %v762 = vrot.slane %v760, 1
    %v763 = vor.u32 %v758, %v762
    %v765 = vshll.u32 %v755, 16
    %v767 = vrot.slane %v765, 1
    %v768 = vsel %vm155, %v763, %v767
    %v770 = vshrl.u32 %v748, 16
    %v772 = vshll.u32 %v748, 16
    %v774 = vrot.slane %v772, 1
    %v775 = vor.u32 %v770, %v774
    %v777 = vshll.u32 %v756, 16
    %v779 = vrot.slane %v777, 1
    %v780 = vsel %vm155, %v775, %v779
    %v783 = vrot.slane %v747, 1
    %v784 = vrot.slane %v755, 1
    %v785 = vsel %vm182, %v783, %v784
    %v786 = vrot.slane %v748, 1
    %v787 = vrot.slane %v756, 1
    %v788 = vsel %vm182, %v786, %v787
    %v791 = vrot.slane %v758, 1
    %v792 = vrot.slane %v760, 2
    %v793 = vor.u32 %v791, %v792
    %v794 = vshrl.u32 %v755, 16
    %v796 = vrot.slane %v794, 1
    %v797 = vrot.slane %v765, 2
    %v798 = vor.u32 %v796, %v797
    %v799 = vsel %vm191, %v793, %v798
    %v800 = vrot.slane %v770, 1
    %v801 = vrot.slane %v772, 2
    %v802 = vor.u32 %v800, %v801
    %v803 = vshrl.u32 %v756, 16
    %v805 = vrot.slane %v803, 1
    %v806 = vrot.slane %v777, 2
    %v807 = vor.u32 %v805, %v806
    %v808 = vsel %vm191, %v802, %v807
    %v811 = vrot.slane %v747, 2
    %v812 = vrot.slane %v755, 2
    %v813 = vsel %vm212, %v811, %v812
    %v814 = vrot.slane %v748, 2
    %v815 = vrot.slane %v756, 2
    %v816 = vsel %vm212, %v814, %v815
    %s819 = scalar_lea.vmem [#allocation6], 320
    %v820 = vld [vmem:[%s819] sm:$0xf]
    %v821 = vld [vmem:[%s819 + $0x4] sm:$0xf]
    %v822 = vld [vmem:[%s819 + $0x8] sm:$0xf]
    %v823 = vld [vmem:[%s819 + $0xc] sm:$0xf]
    %v824 = vld [vmem:[%s819 + $0x10] sm:$0xf]
    %v825 = vld [vmem:[%s819 + $0x14] sm:$0xf]
    %v826 = vld [vmem:[%s819 + $0x18] sm:$0xf]
    %v827 = vld [vmem:[%s819 + $0x1c] sm:$0xf]
    %v828 = vld [vmem:[%s819 + $0x20] sm:$0xf]
    %v829 = vld [vmem:[%s819 + $0x24] sm:$0xf]
    %v830 = vld [vmem:[%s819 + $0x28] sm:$0xf]
    %v831 = vld [vmem:[%s819 + $0x2c] sm:$0xf]
    %v832 = vld [vmem:[%s819 + $0x30] sm:$0xf]
    %v833 = vld [vmem:[%s819 + $0x34] sm:$0xf]
    %v834 = vld [vmem:[%s819 + $0x38] sm:$0xf]
    %v835 = vld [vmem:[%s819 + $0x3c] sm:$0xf]
    %v836 = vld [vmem:[%s819 + $0x40] sm:$0xf]
    %v837 = vld [vmem:[%s819 + $0x44] sm:$0xf]
    %v838 = vld [vmem:[%s819 + $0x48] sm:$0xf]
    %v839 = vld [vmem:[%s819 + $0x4c] sm:$0xf]
    %v840 = vld [vmem:[%s819 + $0x50] sm:$0xf]
    %v841 = vld [vmem:[%s819 + $0x54] sm:$0xf]
    %v842 = vld [vmem:[%s819 + $0x58] sm:$0xf]
    %v843 = vld [vmem:[%s819 + $0x5c] sm:$0xf]
    %v844 = vld [vmem:[%s819 + $0x60] sm:$0xf]
    %v845 = vld [vmem:[%s819 + $0x64] sm:$0xf]
    %v846 = vld [vmem:[%s819 + $0x68] sm:$0xf]
    %v847 = vld [vmem:[%s819 + $0x6c] sm:$0xf]
    %v848 = vld [vmem:[%s819 + $0x70] sm:$0xf]
    %v849 = vld [vmem:[%s819 + $0x74] sm:$0xf]
    %v850 = vld [vmem:[%s819 + $0x78] sm:$0xf]
    %v851 = vld [vmem:[%s819 + $0x7c] sm:$0xf]
    %v852 = vld [vmem:[%s819 + $0x80] sm:$0xf]
    %v853 = vld [vmem:[%s819 + $0x84] sm:$0xf]
    %v854 = vld [vmem:[%s819 + $0x88] sm:$0xf]
    %v855 = vld [vmem:[%s819 + $0x8c] sm:$0xf]
    %v856 = vld [vmem:[%s819 + $0x90] sm:$0xf]
    %v857 = vld [vmem:[%s819 + $0x94] sm:$0xf]
    %v858 = vld [vmem:[%s819 + $0x98] sm:$0xf]
    %v859 = vld [vmem:[%s819 + $0x9c] sm:$0xf]
    %v860 = vld [vmem:[%s819 + $0xa0] sm:$0xf]
    %v861 = vld [vmem:[%s819 + $0xa4] sm:$0xf]
    %v862 = vld [vmem:[%s819 + $0xa8] sm:$0xf]
    %v863 = vld [vmem:[%s819 + $0xac] sm:$0xf]
    %v864 = vld [vmem:[%s819 + $0xb0] sm:$0xf]
    %v865 = vld [vmem:[%s819 + $0xb4] sm:$0xf]
    %v866 = vld [vmem:[%s819 + $0xb8] sm:$0xf]
    %v867 = vld [vmem:[%s819 + $0xbc] sm:$0xf]
    %v868 = vld [vmem:[%s819 + $0xc0] sm:$0xf]
    %v869 = vld [vmem:[%s819 + $0xc4] sm:$0xf]
    %v870 = vld [vmem:[%s819 + $0xc8] sm:$0xf]
    %v871 = vld [vmem:[%s819 + $0xcc] sm:$0xf]
    %v872 = vld [vmem:[%s819 + $0xd0] sm:$0xf]
    %v873 = vld [vmem:[%s819 + $0xd4] sm:$0xf]
    %v874 = vld [vmem:[%s819 + $0xd8] sm:$0xf]
    %v875 = vld [vmem:[%s819 + $0xdc] sm:$0xf]
    %v876 = vld [vmem:[%s819 + $0xe0] sm:$0xf]
    %v877 = vld [vmem:[%s819 + $0xe4] sm:$0xf]
    %v878 = vld [vmem:[%s819 + $0xe8] sm:$0xf]
    %v879 = vld [vmem:[%s819 + $0xec] sm:$0xf]
    %v880 = vld [vmem:[%s819 + $0xf0] sm:$0xf]
    %v881 = vld [vmem:[%s819 + $0xf4] sm:$0xf]
    %v882 = vld [vmem:[%s819 + $0xf8] sm:$0xf]
    %v883 = vld [vmem:[%s819 + $0xfc] sm:$0xf]
    %v884 = vld [vmem:[%s819 + $0x100] sm:$0xf]
    %v885 = vld [vmem:[%s819 + $0x104] sm:$0xf]
    %v886 = vld [vmem:[%s819 + $0x108] sm:$0xf]
    %v887 = vld [vmem:[%s819 + $0x10c] sm:$0xf]
    %v888 = vld [vmem:[%s819 + $0x110] sm:$0xf]
    %v889 = vld [vmem:[%s819 + $0x114] sm:$0xf]
    %v890 = vld [vmem:[%s819 + $0x118] sm:$0xf]
    %v891 = vld [vmem:[%s819 + $0x11c] sm:$0xf]
    %v892 = vld [vmem:[%s819 + $0x120] sm:$0xf]
    %v893 = vld [vmem:[%s819 + $0x124] sm:$0xf]
    %v894 = vld [vmem:[%s819 + $0x128] sm:$0xf]
    %v895 = vld [vmem:[%s819 + $0x12c] sm:$0xf]
    %v896 = vld [vmem:[%s819 + $0x130] sm:$0xf]
    %v897 = vld [vmem:[%s819 + $0x134] sm:$0xf]
    %v898 = vld [vmem:[%s819 + $0x138] sm:$0xf]
    %v899 = vld [vmem:[%s819 + $0x13c] sm:$0xf]
    %s900 = scalar_lea.vmem %s3, 1
    %v901 = vld [vmem:[%s900] sm:$0x1]
    %v903 = vlaneseq
    %v904 = vshrl.u32 %v903, 7
    %v905 = vsub.s32 0, %v904
    %v906 = vrot.slane %v901, %v905
    %v988 = vunpack.c.l.b16 %v820
    %v989 = vunpack.c.l.b16 %v821
    %v990 = vunpack.c.l.b16 %v822
    %v991 = vunpack.c.l.b16 %v823
    %v992 = vunpack.c.l.b16 %v824
    %v993 = vunpack.c.l.b16 %v825
    %v994 = vunpack.c.l.b16 %v826
    %v995 = vunpack.c.l.b16 %v827
    %v996 = vunpack.c.l.b16 %v828
    %v997 = vunpack.c.l.b16 %v829
    %v998 = vunpack.c.l.b16 %v830
    %v999 = vunpack.c.l.b16 %v831
    %v1000 = vunpack.c.l.b16 %v832
    %v1001 = vunpack.c.l.b16 %v833
    %v1002 = vunpack.c.l.b16 %v834
    %v1003 = vunpack.c.l.b16 %v835
    %v1004 = vunpack.c.l.b16 %v836
    %v1005 = vunpack.c.l.b16 %v837
    %v1006 = vunpack.c.l.b16 %v838
    %v1007 = vunpack.c.l.b16 %v839
    %v1008 = vunpack.c.l.b16 %v840
    %v1009 = vunpack.c.l.b16 %v841
    %v1010 = vunpack.c.l.b16 %v842
    %v1011 = vunpack.c.l.b16 %v843
    %v1012 = vunpack.c.l.b16 %v844
    %v1013 = vunpack.c.l.b16 %v845
    %v1014 = vunpack.c.l.b16 %v846
    %v1015 = vunpack.c.l.b16 %v847
    %v1016 = vunpack.c.l.b16 %v848
    %v1017 = vunpack.c.l.b16 %v849
    %v1018 = vunpack.c.l.b16 %v850
    %v1019 = vunpack.c.l.b16 %v851
    %v1020 = vunpack.c.l.b16 %v852
    %v1021 = vunpack.c.l.b16 %v853
    %v1022 = vunpack.c.l.b16 %v854
    %v1023 = vunpack.c.l.b16 %v855
    %v1024 = vunpack.c.l.b16 %v856
    %v1025 = vunpack.c.l.b16 %v857
    %v1026 = vunpack.c.l.b16 %v858
    %v1027 = vunpack.c.l.b16 %v859
    %v1028 = vunpack.c.l.b16 %v860
    %v1029 = vunpack.c.l.b16 %v861
    %v1030 = vunpack.c.l.b16 %v862
    %v1031 = vunpack.c.l.b16 %v863
    %v1032 = vunpack.c.l.b16 %v864
    %v1033 = vunpack.c.l.b16 %v865
    %v1034 = vunpack.c.l.b16 %v866
    %v1035 = vunpack.c.l.b16 %v867
    %v1036 = vunpack.c.l.b16 %v868
    %v1037 = vunpack.c.l.b16 %v869
    %v1038 = vunpack.c.l.b16 %v870
    %v1039 = vunpack.c.l.b16 %v871
    %v1040 = vunpack.c.l.b16 %v872
    %v1041 = vunpack.c.l.b16 %v873
    %v1042 = vunpack.c.l.b16 %v874
    %v1043 = vunpack.c.l.b16 %v875
    %v1044 = vunpack.c.l.b16 %v876
    %v1045 = vunpack.c.l.b16 %v877
    %v1046 = vunpack.c.l.b16 %v878
    %v1047 = vunpack.c.l.b16 %v879
    %v1048 = vunpack.c.l.b16 %v880
    %v1049 = vunpack.c.l.b16 %v881
    %v1050 = vunpack.c.l.b16 %v882
    %v1051 = vunpack.c.l.b16 %v883
    %v1052 = vunpack.c.l.b16 %v884
    %v1053 = vunpack.c.l.b16 %v885
    %v1054 = vunpack.c.l.b16 %v886
    %v1055 = vunpack.c.l.b16 %v887
    %v1056 = vunpack.c.l.b16 %v888
    %v1057 = vunpack.c.l.b16 %v889
    %v1058 = vunpack.c.l.b16 %v890
    %v1059 = vunpack.c.l.b16 %v891
    %v1060 = vunpack.c.l.b16 %v892
    %v1061 = vunpack.c.l.b16 %v893
    %v1062 = vunpack.c.l.b16 %v894
    %v1063 = vunpack.c.l.b16 %v895
    %v1064 = vunpack.c.l.b16 %v896
    %v1065 = vunpack.c.l.b16 %v897
    %v1066 = vunpack.c.l.b16 %v898
    %v1067 = vunpack.c.l.b16 %v899
    %v1068 = vpack.c.b16 %v989, %v988
    %v1069 = vpack.c.b16 %v991, %v990
    %v1070 = vpack.c.b16 %v993, %v992
    %v1071 = vpack.c.b16 %v995, %v994
    %v1072 = vpack.c.b16 %v997, %v996
    %v1073 = vpack.c.b16 %v999, %v998
    %v1074 = vpack.c.b16 %v1001, %v1000
    %v1075 = vpack.c.b16 %v1003, %v1002
    %v1076 = vpack.c.b16 %v1005, %v1004
    %v1077 = vpack.c.b16 %v1007, %v1006
    %v1078 = vpack.c.b16 %v1009, %v1008
    %v1079 = vpack.c.b16 %v1011, %v1010
    %v1080 = vpack.c.b16 %v1013, %v1012
    %v1081 = vpack.c.b16 %v1015, %v1014
    %v1082 = vpack.c.b16 %v1017, %v1016
    %v1083 = vpack.c.b16 %v1019, %v1018
    %v1084 = vpack.c.b16 %v1021, %v1020
    %v1085 = vpack.c.b16 %v1023, %v1022
    %v1086 = vpack.c.b16 %v1025, %v1024
    %v1087 = vpack.c.b16 %v1027, %v1026
    %v1088 = vpack.c.b16 %v1029, %v1028
    %v1089 = vpack.c.b16 %v1031, %v1030
    %v1090 = vpack.c.b16 %v1033, %v1032
    %v1091 = vpack.c.b16 %v1035, %v1034
    %v1092 = vpack.c.b16 %v1037, %v1036
    %v1093 = vpack.c.b16 %v1039, %v1038
    %v1094 = vpack.c.b16 %v1041, %v1040
    %v1095 = vpack.c.b16 %v1043, %v1042
    %v1096 = vpack.c.b16 %v1045, %v1044
    %v1097 = vpack.c.b16 %v1047, %v1046
    %v1098 = vpack.c.b16 %v1049, %v1048
    %v1099 = vpack.c.b16 %v1051, %v1050
    %v1100 = vpack.c.b16 %v1053, %v1052
    %v1101 = vpack.c.b16 %v1055, %v1054
    %v1102 = vpack.c.b16 %v1057, %v1056
    %v1103 = vpack.c.b16 %v1059, %v1058
    %v1104 = vpack.c.b16 %v1061, %v1060
    %v1105 = vpack.c.b16 %v1063, %v1062
    %v1106 = vpack.c.b16 %v1065, %v1064
    %v1107 = vpack.c.b16 %v1067, %v1066
    %1148 = vmatprep.subr.bf16.mxu0 0
    %1149 = vmatpush1.bf16.msra.mxu0 %v1068
    %1150 = vmatprep.subr.bf16.mxu0 0
    %1151 = vmatpush1.bf16.msra.mxu0 %v1069
    %1152 = vmatprep.subr.bf16.mxu0 0
    %1153 = vmatpush1.bf16.msra.mxu0 %v1070
    %1154 = vmatprep.subr.bf16.mxu0 0
    %1155 = vmatpush1.bf16.msra.mxu0 %v1071
    %1156 = vmatprep.subr.bf16.mxu0 0
    %1157 = vmatpush1.bf16.msra.mxu0 %v1072
    %1158 = vmatprep.subr.bf16.mxu0 0
    %1159 = vmatpush1.bf16.msra.mxu0 %v1073
    %1160 = vmatprep.subr.bf16.mxu0 0
    %1161 = vmatpush1.bf16.msra.mxu0 %v1074
    %1162 = vmatprep.subr.bf16.mxu0 0
    %1163 = vmatpush1.bf16.msra.mxu0 %v1075
    %1164 = vmatprep.subr.bf16.mxu0 0
    %1165 = vmatpush1.bf16.msra.mxu0 %v1076
    %1166 = vmatprep.subr.bf16.mxu0 0
    %1167 = vmatpush1.bf16.msra.mxu0 %v1077
    %1168 = vmatprep.subr.bf16.mxu0 0
    %1169 = vmatpush1.bf16.msra.mxu0 %v1078
    %1170 = vmatprep.subr.bf16.mxu0 0
    %1171 = vmatpush1.bf16.msra.mxu0 %v1079
    %1172 = vmatprep.subr.bf16.mxu0 0
    %1173 = vmatpush1.bf16.msra.mxu0 %v1080
    %1174 = vmatprep.subr.bf16.mxu0 0
    %1175 = vmatpush1.bf16.msra.mxu0 %v1081
    %1176 = vmatprep.subr.bf16.mxu0 0
    %1177 = vmatpush1.bf16.msra.mxu0 %v1082
    %1178 = vmatprep.subr.bf16.mxu0 0
    %1179 = vmatpush1.bf16.msra.mxu0 %v1083
    %1180 = vmatprep.mubr.bf16.mxu0 %v768
    %1181 = vmatmul.mubr.bf16.gmra.mrb[0].mxu0 %v747
    %v1182 = vpop.f32.mrb[0].mxu0
    %v1183 = vadd.f32 %v906, %v1182
    %v1184 = vpop.f32.mrb[0].mxu0
    %v1185 = vpop.f32.mrb[0].mxu0
    %v1186 = vadd.f32 %v906, %v1185
    %v1187 = vpop.f32.mrb[0].mxu0
    %1188 = vmatprep.mubr.bf16.mxu0 %v780
    %1189 = vmatmul.mubr.bf16.gmra.mrb[0].mxu0 %v748
    %v1190 = vpop.f32.mrb[0].mxu0
    %v1191 = vadd.f32 %v906, %v1190
    %v1192 = vpop.f32.mrb[0].mxu0
    %v1193 = vpop.f32.mrb[0].mxu0
    %v1194 = vadd.f32 %v906, %v1193
    %v1195 = vpop.f32.mrb[0].mxu0
    %1196 = vdwg.mxu0
    %1197 = vmatprep.subr.bf16.mxu0 0
    %1198 = vmatpush1.bf16.msra.mxu0 %v1084
    %1199 = vmatprep.subr.bf16.mxu0 0
    %1200 = vmatpush1.bf16.msra.mxu0 %v1085
    %1201 = vmatprep.subr.bf16.mxu0 0
    %1202 = vmatpush1.bf16.msra.mxu0 %v1086
    %1203 = vmatprep.subr.bf16.mxu0 0
    %1204 = vmatpush1.bf16.msra.mxu0 %v1087
    %1205 = vmatprep.subr.bf16.mxu0 0
    %1206 = vmatpush1.bf16.msra.mxu0 %v1088
    %1207 = vmatprep.subr.bf16.mxu0 0
    %1208 = vmatpush1.bf16.msra.mxu0 %v1089
    %1209 = vmatprep.subr.bf16.mxu0 0
    %1210 = vmatpush1.bf16.msra.mxu0 %v1090
    %1211 = vmatprep.subr.bf16.mxu0 0
    %1212 = vmatpush1.bf16.msra.mxu0 %v1091
    %1213 = vmatprep.subr.bf16.mxu0 0
    %1214 = vmatpush1.bf16.msra.mxu0 %v1092
    %1215 = vmatprep.subr.bf16.mxu0 0
    %1216 = vmatpush1.bf16.msra.mxu0 %v1093
    %1217 = vmatprep.subr.bf16.mxu0 0
    %1218 = vmatpush1.bf16.msra.mxu0 %v1094
    %1219 = vmatprep.subr.bf16.mxu0 0
    %1220 = vmatpush1.bf16.msra.mxu0 %v1095
    %1221 = vmatprep.subr.bf16.mxu0 0
    %1222 = vmatpush1.bf16.msra.mxu0 %v1096
    %1223 = vmatprep.subr.bf16.mxu0 0
    %1224 = vmatpush1.bf16.msra.mxu0 %v1097
    %1225 = vmatprep.subr.bf16.mxu0 0
    %1226 = vmatpush1.bf16.msra.mxu0 %v1098
    %1227 = vmatprep.subr.bf16.mxu0 0
    %1228 = vmatpush1.bf16.msra.mxu0 %v1099
    %1229 = vmatprep.mubr.bf16.mxu0 %v799
    %1230 = vmatmul.mubr.bf16.gmra.mrb[0].mxu0 %v785
    %v1231 = vpop.f32.mrb[0].mxu0
    %v1232 = vadd.f32 %v1183, %v1231
    %v1233 = vpop.f32.mrb[0].mxu0
    %v1234 = vpop.f32.mrb[0].mxu0
    %v1235 = vadd.f32 %v1186, %v1234
    %v1236 = vpop.f32.mrb[0].mxu0
    %1237 = vmatprep.mubr.bf16.mxu0 %v808
    %1238 = vmatmul.mubr.bf16.gmra.mrb[0].mxu0 %v788
    %v1239 = vpop.f32.mrb[0].mxu0
    %v1240 = vadd.f32 %v1191, %v1239
    %v1241 = vpop.f32.mrb[0].mxu0
    %v1242 = vpop.f32.mrb[0].mxu0
    %v1243 = vadd.f32 %v1194, %v1242
    %v1244 = vpop.f32.mrb[0].mxu0
    %1245 = vdwg.mxu0
    %1246 = vmatprep.subr.bf16.mxu0 0
    %1247 = vmatpush1.bf16.msra.mxu0 %v1100
    %1248 = vmatprep.subr.bf16.mxu0 0
    %1249 = vmatpush1.bf16.msra.mxu0 %v1101
    %1250 = vmatprep.subr.bf16.mxu0 0
    %1251 = vmatpush1.bf16.msra.mxu0 %v1102
    %1252 = vmatprep.subr.bf16.mxu0 0
    %1253 = vmatpush1.bf16.msra.mxu0 %v1103
    %1254 = vmatprep.subr.bf16.mxu0 0
    %1255 = vmatpush1.bf16.msra.mxu0 %v1104
    %1256 = vmatprep.subr.bf16.mxu0 0
    %1257 = vmatpush1.bf16.msra.mxu0 %v1105
    %1258 = vmatprep.subr.bf16.mxu0 0
    %1259 = vmatpush1.bf16.msra.mxu0 %v1106
    %1260 = vmatprep.subr.bf16.mxu0 0
    %1261 = vmatpush1.bf16.msra.mxu0 %v1107
    %1262 = vmatprep.subr.bf16.mxu0 0
    %1263 = vmatpush1.bf16.msra.mxu0 0
    %1264 = vmatprep.subr.bf16.mxu0 0
    %1265 = vmatpush1.bf16.msra.mxu0 0
    %1266 = vmatprep.subr.bf16.mxu0 0
    %1267 = vmatpush1.bf16.msra.mxu0 0
    %1268 = vmatprep.subr.bf16.mxu0 0
    %1269 = vmatpush1.bf16.msra.mxu0 0
    %1270 = vmatprep.subr.bf16.mxu0 0
    %1271 = vmatpush1.bf16.msra.mxu0 0
    %1272 = vmatprep.subr.bf16.mxu0 0
    %1273 = vmatpush1.bf16.msra.mxu0 0
    %1274 = vmatprep.subr.bf16.mxu0 0
    %1275 = vmatpush1.bf16.msra.mxu0 0
    %1276 = vmatprep.subr.bf16.mxu0 0
    %1277 = vmatpush1.bf16.msra.mxu0 0
    %1278 = vmatprep.mubr.bf16.mxu0 0
    %1279 = vmatmul.mubr.bf16.gmra.mrb[0].mxu0 %v813
    %v1280 = vpop.f32.mrb[0].mxu0
    %v1281 = vadd.f32 %v1232, %v1280
    %v1282 = vpop.f32.mrb[0].mxu0
    %v1283 = vpop.f32.mrb[0].mxu0
    %v1284 = vadd.f32 %v1235, %v1283
    %v1285 = vpop.f32.mrb[0].mxu0
    %1286 = vmatprep.mubr.bf16.mxu0 0
    %1287 = vmatmul.mubr.bf16.gmra.mrb[0].mxu0 %v816
    %v1288 = vpop.f32.mrb[0].mxu0
    %v1289 = vadd.f32 %v1240, %v1288
    %v1290 = vpop.f32.mrb[0].mxu0
    %v1291 = vpop.f32.mrb[0].mxu0
    %v1292 = vadd.f32 %v1243, %v1291
    %v1293 = vpop.f32.mrb[0].mxu0
    %1294 = vdwg.mxu0
    %v1295 = vmax.f32 %v1281, 0.0
    %v1296 = vmax.f32 %v1284, 0.0
    %v1297 = vmax.f32 %v1289, 0.0
    %v1298 = vmax.f32 %v1292, 0.0
    %v1299 = vsel %vm90, %v1295, 0.0
    %v1300 = vsel %vm91, %v1296, 0.0
    %v1301 = vsel %vm92, %v1297, 0.0
    %v1302 = vsel %vm93, %v1298, 0.0
    %1303 = vst [vmem:[#allocation8] sm:$0xff] %v1299
    %1304 = vst [vmem:[#allocation8 + $0x8] sm:$0xff] %v1300
    %1305 = vst [vmem:[#allocation8 + $0x10] sm:$0xff] %v1301
    %1306 = vst [vmem:[#allocation8 + $0x18] sm:$0xff] %v1302
    // Predicated region
    $region26: #{tpu_custom_call.1} parent=1 // pred_check
      _
    $region27: #{tpu_custom_call.1} parent=1 // pred_check_branch
      %1308 = sbr.rel (0) target = $region29
    $region28: #{tpu_custom_call.1} parent=1 // pred_region
      %s1310 = ssub.s32 512, 512
      %1311 = vsyncadd [#allocation5], %s1310
      %s1312 = sshll.u32 [#allocation8], 4
      %s1313 = int_to_ptr.vmem [resolvable:$true] %s1312
      %1318 = dma.vmem_to_hbm [thread:$0]  %s1313, 512, %s4, [#allocation5], 128, 128, 8
    $region29: #{tpu_custom_call.1} parent=1 // pred_fallthru
      _
    // Predicated region
    $region30: #{tpu_custom_call.1} parent=1 // pred_check
      _
    $region31: #{tpu_custom_call.1} parent=1 // pred_check_branch
      %1320 = sbr.rel (0) target = $region33
    $region32: #{tpu_custom_call.1} parent=1 // pred_region
      %1321 = dma.done [#allocation5], 512
    $region33: #{tpu_custom_call.1} parent=1 // pred_fallthru
      _
    %1322 = vsyncpa [#allocation4], 1
    %1323 = vsyncpa [#allocation7], 1
    %1324 = vsyncpa [#allocation5], 1

</llo_original>
